<compile_context>
chip_gen: v6e
topology: v6e:2x2x1
jax: 0.10.0
libtpu: 0.0.40
codegen_flags: <defaults>
</compile_context>

<pallas_src>
import math

import jax
import jax.numpy as jnp
from jax.experimental import pallas as pl
from jax.experimental.pallas import tpu as pltpu


def _round_up(v, m):
    return ((v + m - 1) // m) * m


def _linear_relu_mxu_kernel(x_ref, w_ref, b_ref, o_ref):
    # x: (bm, K), w: (K, bn), b: (1, bn), o: (bm, bn).
    y = jnp.dot(x_ref[...], w_ref[...], preferred_element_type=jnp.float32)
    y = y + b_ref[...].astype(jnp.float32)
    o_ref[...] = jnp.maximum(y, 0.0).astype(o_ref.dtype)


def _linear_relu_outer_kernel(x_ref, w_ref, b_ref, o_ref):
    # K == 1 fast path: (bm,1) x (1,bn) outer product -> plain VPU broadcast
    # multiply+add; skips the MXU push/pop round-trip entirely.
    y = x_ref[...].astype(jnp.float32) * w_ref[...].astype(jnp.float32)
    y = y + b_ref[...].astype(jnp.float32)
    o_ref[...] = jnp.maximum(y, 0.0).astype(o_ref.dtype)


def hidden_layer_forward(x, w_t, b, *, bm=512, bn=512):
    """relu(x @ w_t + b)  -- HiddenLayer.forward.

    x:   (B, K)   f32 or bf16
    w_t: (K, N)   same dtype as x  (nn.Linear weight, pre-transposed)
    b:   (1, N)   same dtype as x
    """
    B, K = x.shape
    K2, N = w_t.shape
    assert K == K2 and b.shape == (1, N)

    # Batch tile: multiple of the sublane-packing granule (8 f32 / 16 bf16);
    # sized so there are >=2 batch tiles when possible (v7x megacore).
    sub = 8 * max(1, 4 // jnp.dtype(x.dtype).itemsize)
    bm = max(sub, min(bm, _round_up(pl.cdiv(B, 2), sub)))
    bm = _round_up(bm, sub)
    # Output-feature tile: always a multiple of 128 lanes so stores are
    # unmasked vst; only the final partial N tile (if any) is masked.
    bn = max(128, min(bn, _round_up(N, 128)))
    bn = _round_up(bn, 128)

    # Batch innermost: the weight/bias block index (0, j) is constant across
    # consecutive grid steps, so Pallas keeps their VMEM tiles resident
    # instead of re-DMA'ing them every step.
    grid = (pl.cdiv(N, bn), pl.cdiv(B, bm))

    kernel = _linear_relu_outer_kernel if K == 1 else _linear_relu_mxu_kernel

    # TODO(synk): for very large input_size, add a K grid axis ("arbitrary")
    # with an f32 VMEM accumulator (init/finalize via pl.when) and zero-filled
    # K padding; unblocked K is fine for this module's small input_size.
    return pl.pallas_call(
        kernel,
        out_shape=jax.ShapeDtypeStruct((B, N), x.dtype),
        grid_spec=pltpu.PrefetchScalarGridSpec(
            num_scalar_prefetch=0,
            grid=grid,
            in_specs=[
                pl.BlockSpec((bm, K), lambda j, i: (i, 0)),   # x: stream over batch
                pl.BlockSpec((K, bn), lambda j, i: (0, j)),   # weights: fixed per j
                pl.BlockSpec((1, bn), lambda j, i: (0, j)),   # bias:    fixed per j
            ],
            out_specs=pl.BlockSpec((bm, bn), lambda j, i: (i, j)),
        ),
        compiler_params=pltpu.CompilerParams(
            # Both axes independent -> megacore sharding on v7x, harmless on
            # v5e/v6e. Double-buffered tile footprint at these sizes is far
            # below the default scoped VMEM (32 MiB on v7x), so no
            # vmem_limit_bytes override is needed.
            dimension_semantics=("parallel", "parallel"),
        ),
    )(x, w_t, b)


def init_params(key, input_size, output_size, dtype=jnp.float32):
    # Mirror nn.Linear defaults: U(-1/sqrt(fan_in), 1/sqrt(fan_in)).
    k_w, k_b = jax.random.split(key)
    bound = 1.0 / math.sqrt(input_size)
    w_t = jax.random.uniform(k_w, (input_size, output_size), jnp.float32, -bound, bound)
    b = jax.random.uniform(k_b, (1, output_size), jnp.float32, -bound, bound)
    return w_t.astype(dtype), b.astype(dtype)


if __name__ == "__main__":
    key = jax.random.PRNGKey(0)
    k_x1, k_p1, k_x2, k_p2, k_x3, k_p3 = jax.random.split(key, 6)

    # --- Case 1: MXU path, f32; 2 batch tiles x 1 N tile, lane-dense 128-wide
    # output, weights DMA'd once and reused across inner batch steps.
    B1, K1, N1 = 512, 16, 128
    x1 = jax.random.normal(k_x1, (B1, K1), jnp.float32)
    w1, b1 = init_params(k_p1, K1, N1)
    out1 = hidden_layer_forward(x1, w1, b1)
    jax.block_until_ready(out1)
    ref1 = jnp.maximum(x1 @ w1 + b1, 0.0)
    assert out1.shape == (B1, N1)
    assert jnp.allclose(out1, ref1, atol=1e-5), "mismatch (MXU f32 path)"

    # --- Case 2: input_size=1 -> VPU outer-product path; N=100 exercises the
    # masked partial trailing N tile (bn stays 128, no wrapper pad/slice).
    B2, K2, N2 = 256, 1, 100
    x2 = jax.random.normal(k_x2, (B2, K2), jnp.float32)
    w2, b2 = init_params(k_p2, K2, N2)
    out2 = hidden_layer_forward(x2, w2, b2)
    jax.block_until_ready(out2)
    ref2 = jnp.maximum(x2 @ w2 + b2, 0.0)
    assert out2.shape == (B2, N2)
    assert jnp.allclose(out2, ref2, atol=1e-5), "mismatch (outer / partial-N path)"

    # --- Case 3: bf16 I/O (halves HBM traffic); MXU still accumulates in f32,
    # bias+ReLU in f32, cast only at the store. B3 is not a tile multiple, so
    # the trailing partial batch tile (masked store) is exercised too.
    B3, K3, N3 = 264, 16, 128
    x3 = jax.random.normal(k_x3, (B3, K3), jnp.float32).astype(jnp.bfloat16)
    w3, b3 = init_params(k_p3, K3, N3, dtype=jnp.bfloat16)
    out3 = hidden_layer_forward(x3, w3, b3)
    jax.block_until_ready(out3)
    ref3 = jnp.maximum(
        x3.astype(jnp.float32) @ w3.astype(jnp.float32) + b3.astype(jnp.float32), 0.0)
    assert out3.shape == (B3, N3)
    assert jnp.allclose(out3.astype(jnp.float32), ref3, atol=5e-2), "mismatch (bf16 path)"

    print("KERNEL_OK")
</pallas_src>

<mosaic_0001>
module attributes {stable_mosaic.version = 11 : i64} {
  func.func @_linear_relu_mxu_kernel(%arg0: i32, %arg1: i32, %arg2: memref<256x16xf32, #tpu.memory_space<vmem>>, %arg3: memref<16x128xf32, #tpu.memory_space<vmem>>, %arg4: memref<1x128xf32, #tpu.memory_space<vmem>>, %arg5: memref<256x128xf32, #tpu.memory_space<vmem>>) attributes {dimension_semantics = [#tpu.dimension_semantics<parallel>, #tpu.dimension_semantics<parallel>], iteration_bounds = array<i64: 1, 2>, scalar_prefetch = 0 : i64, scratch_operands = 0 : i64, tpu.core_type = #tpu.core_type<tc>, window_params = [{transform_indices = @transform_0, window_bounds = array<i64: 256, 16>}, {transform_indices = @transform_1, window_bounds = array<i64: 16, 128>}, {transform_indices = @transform_2, window_bounds = array<i64: 1, 128>}, {transform_indices = @transform_3, window_bounds = array<i64: 256, 128>}]} {
    %c0 = arith.constant 0 : index
    %c0_0 = arith.constant 0 : index
    %0 = vector.load %arg2[%c0, %c0_0] : memref<256x16xf32, #tpu.memory_space<vmem>>, vector<256x16xf32>
    %c0_1 = arith.constant 0 : index
    %c0_2 = arith.constant 0 : index
    %1 = vector.load %arg3[%c0_1, %c0_2] : memref<16x128xf32, #tpu.memory_space<vmem>>, vector<16x128xf32>
    %cst = arith.constant dense<0.000000e+00> : vector<256x128xf32>
    %2 = tpu.matmul %0, %1, %cst {dimension_numbers = #tpu.dot_dimension_numbers<[1], [0], [0], [1], [0, 0, 1, 1], [], []>} : vector<256x16xf32>, vector<16x128xf32>, vector<256x128xf32> -> vector<256x128xf32>
    %c0_3 = arith.constant 0 : index
    %c0_4 = arith.constant 0 : index
    %3 = vector.load %arg4[%c0_3, %c0_4] : memref<1x128xf32, #tpu.memory_space<vmem>>, vector<1x128xf32>
    %4 = vector.broadcast %3 : vector<1x128xf32> to vector<256x128xf32>
    %5 = arith.addf %2, %4 : vector<256x128xf32>
    %cst_5 = arith.constant 0.000000e+00 : f32
    %6 = vector.broadcast %cst_5 : f32 to vector<256x128xf32>
    %7 = arith.maximumf %5, %6 : vector<256x128xf32>
    %c0_6 = arith.constant 0 : index
    %c0_7 = arith.constant 0 : index
    %8 = vector.load %arg5[%c0_6, %c0_7] : memref<256x128xf32, #tpu.memory_space<vmem>>, vector<256x128xf32>
    tpu.vector_store %arg5[%c0_6, %c0_7], %7 {strides = array<i32>} : memref<256x128xf32, #tpu.memory_space<vmem>>, vector<256x128xf32>,
    return
  }
  func.func @transform_0(%arg0: i32, %arg1: i32) -> (i32, i32) {
    %c0_i32 = arith.constant 0 : i32
    %c0_i32_0 = arith.constant 0 : i32
    return %arg1, %c0_i32 : i32, i32
  }
  func.func @transform_1(%arg0: i32, %arg1: i32) -> (i32, i32) {
    %c0_i32 = arith.constant 0 : i32
    %c0_i32_0 = arith.constant 0 : i32
    return %c0_i32, %arg0 : i32, i32
  }
  func.func @transform_2(%arg0: i32, %arg1: i32) -> (i32, i32) {
    %c0_i32 = arith.constant 0 : i32
    %c0_i32_0 = arith.constant 0 : i32
    return %c0_i32, %arg0 : i32, i32
  }
  func.func @transform_3(%arg0: i32, %arg1: i32) -> (i32, i32) {
    %c0_i32 = arith.constant 0 : i32
    return %arg1, %arg0 : i32, i32
  }
}

</mosaic_0001>

<llo_original>
// kernel: tpu_custom_call.1
$region0: #{tpu_custom_call.1}
  #allocation0 [shape = 'u32[]', space=smem, size = 0x4, offset = 0x4, fixed_abs, tag = 'smem constant byte address 0x4 - core index']
  #allocation1 [shape = 'u32[144,128]{1,0:T(1,128)}', space=vmem, size = 0x12000, scoped, tag = 'internal scratch']
  %s0 = inlined_call_operand.vmem [shape: f32[512,16], index: 0, kind: input, shape index: {}]
  %s1 = inlined_call_operand.vmem [shape: f32[16,128], index: 1, kind: input, shape index: {}]
  %s2 = inlined_call_operand.vmem [shape: f32[1,128], index: 2, kind: input, shape index: {}]
  %s3 = inlined_call_operand.hbm [shape: f32[512,128], index: 3, kind: output, shape index: {}]
  %s4 = sld [smem:[#allocation0]]
  $region45: #{tpu_custom_call.1} parent=0
    _
  %s6 = ssub.s32 1, %s4
  %s7 = scalar_select 0, %s6, %s4
  $region1: #{tpu_custom_call.1} parent=0
    #allocation2 [shape = 'u8[262144]{0}', space=vmem, size = 0x40000, scoped, tag = 'output window, operand 0']
    #allocation3 [shape = 's32[2]{0}', space=sflag, size = 0x8, scoped, tag = 'scoped memory for tpu_custom_call.1']
    %8 = vsyncpa [#allocation3], 0
    %s9 = scalar_lea.sflag [#allocation3], 1
    %10 = vsyncpa %s9, 0
    loop: start=0, step=1, limit=4
    $region2: #{tpu_custom_call.1} parent=1 // loop_pre_header
      _
    $region3: #{tpu_custom_call.1} parent=1 // loop_header
      %s12 = sphi 0, %s16
      %p13 = scmp.ge.s32.totalorder %s12, 4
      %s19 = sphi 0, %s31
      %s20 = sphi 0, %s27
      %s21 = sphi 0, %s19
      %s22 = sphi 0, %s20
      %s23 = sphi 0, %s21
      %s24 = sphi 0, %s22
      %s34 = sphi 0, %s36
      %s37 = sphi 0, %s34
      %s38 = sphi 0, %s37
      %s54 = sphi 0, %s38
      %s60 = sphi 0, %s62
      %s63 = sphi 0, %s60
      %s64 = sphi 0, %s63
      %s80 = sphi 0, %s64
      %s86 = sphi 0, %s88
      %s89 = sphi 0, %s86
      %s90 = sphi 0, %s89
      %s106 = sphi 0, %s90
      %s114 = sphi 0, %s116
      %s117 = sphi 0, %s114
      %s118 = sphi 0, %s117
      %s134 = sphi 0, %s118
    $region4: #{tpu_custom_call.1} parent=1 // loop_header_branch
      %15 = sbr.rel (%p13) target = $region8
    $region5: #{tpu_custom_call.1} parent=1 // loop_body
      %s17 = ssub.s32 %s12, 1
      %s18 = ssub.s32 %s12, 2
      %s25 = sadd.s32 1, %s20
      %p26 = scmp.ge.s32.totalorder %s25, 2
      %s27 = scalar_select %p26, 0, %s25
      %s28 = sadd.s32 1, %s19
      %s29 = scalar_select %p26, %s28, %s19
      %p30 = scmp.ge.s32.totalorder %s29, 1
      %s31 = scalar_select %p30, 0, %s29
      %s32 = ssub.s32 %s20, %s27
      %p33 = scmp.eq.s32.totalorder %s32, 0
      %s35 = sadd.s32 %s34, 1
      %s36 = scalar_select %p33, %s34, %s35
      %p39 = pneg %p33
      %p40 = scmp.eq.s32.totalorder %s12, 1
      %p41 = por %p39, %p40
      %p42 = scmp.ne.s32.totalorder %s34, %s37
      %p43 = scmp.eq.s32.totalorder %s12, 0
      %p44 = por %p42, %p43
      %p45 = scmp.ne.s32.totalorder %s34, %s37
      %p46 = scmp.eq.s32.totalorder %s17, 1
      %p47 = por %p45, %p46
      %p48 = scmp.ne.s32.totalorder %s37, %s38
      %p49 = scmp.eq.s32.totalorder %s17, 0
      %p50 = por %p48, %p49
      %p51 = scmp.ne.s32.totalorder %s37, %s38
      %p52 = scmp.eq.s32.totalorder %s18, 1
      %p53 = por %p51, %p52
      %p55 = scmp.ne.s32.totalorder %s38, %s54
      %p56 = scmp.eq.s32.totalorder %s18, 0
      %p57 = por %p55, %p56
      %s58 = ssub.s32 %s19, %s31
      %p59 = scmp.eq.s32.totalorder %s58, 0
      %s61 = sadd.s32 %s60, 1
      %s62 = scalar_select %p59, %s60, %s61
      %p65 = pneg %p59
      %p66 = scmp.eq.s32.totalorder %s12, 1
      %p67 = por %p65, %p66
      %p68 = scmp.ne.s32.totalorder %s60, %s63
      %p69 = scmp.eq.s32.totalorder %s12, 0
      %p70 = por %p68, %p69
      %p71 = scmp.ne.s32.totalorder %s60, %s63
      %p72 = scmp.eq.s32.totalorder %s17, 1
      %p73 = por %p71, %p72
      %p74 = scmp.ne.s32.totalorder %s63, %s64
      %p75 = scmp.eq.s32.totalorder %s17, 0
      %p76 = por %p74, %p75
      %p77 = scmp.ne.s32.totalorder %s63, %s64
      %p78 = scmp.eq.s32.totalorder %s18, 1
      %p79 = por %p77, %p78
      %p81 = scmp.ne.s32.totalorder %s64, %s80
      %p82 = scmp.eq.s32.totalorder %s18, 0
      %p83 = por %p81, %p82
      %s84 = ssub.s32 %s19, %s31
      %p85 = scmp.eq.s32.totalorder %s84, 0
      %s87 = sadd.s32 %s86, 1
      %s88 = scalar_select %p85, %s86, %s87
      %p91 = pneg %p85
      %p92 = scmp.eq.s32.totalorder %s12, 1
      %p93 = por %p91, %p92
      %p94 = scmp.ne.s32.totalorder %s86, %s89
      %p95 = scmp.eq.s32.totalorder %s12, 0
      %p96 = por %p94, %p95
      %p97 = scmp.ne.s32.totalorder %s86, %s89
      %p98 = scmp.eq.s32.totalorder %s17, 1
      %p99 = por %p97, %p98
      %p100 = scmp.ne.s32.totalorder %s89, %s90
      %p101 = scmp.eq.s32.totalorder %s17, 0
      %p102 = por %p100, %p101
      %p103 = scmp.ne.s32.totalorder %s89, %s90
      %p104 = scmp.eq.s32.totalorder %s18, 1
      %p105 = por %p103, %p104
      %p107 = scmp.ne.s32.totalorder %s90, %s106
      %p108 = scmp.eq.s32.totalorder %s18, 0
      %p109 = por %p107, %p108
      %s110 = ssub.s32 %s20, %s27
      %s111 = ssub.s32 %s19, %s31
      %s112 = sor.u32 %s110, %s111
      %p113 = scmp.eq.s32.totalorder %s112, 0
      %s115 = sadd.s32 %s114, 1
      %s116 = scalar_select %p113, %s114, %s115
      %p119 = pneg %p113
      %p120 = scmp.eq.s32.totalorder %s12, 1
      %p121 = por %p119, %p120
      %p122 = scmp.ne.s32.totalorder %s114, %s117
      %p123 = scmp.eq.s32.totalorder %s12, 0
      %p124 = por %p122, %p123
      %p125 = scmp.ne.s32.totalorder %s114, %s117
      %p126 = scmp.eq.s32.totalorder %s17, 1
      %p127 = por %p125, %p126
      %p128 = scmp.ne.s32.totalorder %s117, %s118
      %p129 = scmp.eq.s32.totalorder %s17, 0
      %p130 = por %p128, %p129
      %p131 = scmp.ne.s32.totalorder %s117, %s118
      %p132 = scmp.eq.s32.totalorder %s18, 1
      %p133 = por %p131, %p132
      %p135 = scmp.ne.s32.totalorder %s118, %s134
      %p136 = scmp.eq.s32.totalorder %s18, 0
      %p137 = por %p135, %p136
      %p138 = scmp.le.s32.totalorder 1, %s12
      %p139 = scmp.lt.s32.totalorder %s12, 3
      %p140 = pnand %p138, %p139
      %p141 = pneg %p140
      // Predicated region
      $region9: #{tpu_custom_call.1} parent=5 // pred_check
        _
      $region10: #{tpu_custom_call.1} parent=5 // pred_check_branch
        %143 = sbr.rel (%p140) target = $region12
      $region11: #{tpu_custom_call.1} parent=5 // pred_region
        %s144 = ssub.s32 %s12, 1
        // Predicated region
        $region13: #{tpu_custom_call.1} parent=11 // pred_check
          %p145 = pneg %p76
        $region14: #{tpu_custom_call.1} parent=11 // pred_check_branch
          %147 = sbr.rel (%p145) target = $region16
        $region15: #{tpu_custom_call.1} parent=11 // pred_region
          %p148 = scmp.lt.s32.totalorder %s21, 0
          %s149 = scalar_select %p148, %s21, 0
          %s150 = smul.addr %s149, 8
          %s151 = scalar_lea.vmem %s1, %s150
        $region16: #{tpu_custom_call.1} parent=11 // pred_fallthru
          _
        // Predicated region
        $region17: #{tpu_custom_call.1} parent=11 // pred_check
          %p152 = pneg %p102
        $region18: #{tpu_custom_call.1} parent=11 // pred_check_branch
          %154 = sbr.rel (%p152) target = $region20
        $region19: #{tpu_custom_call.1} parent=11 // pred_region
          %p155 = scmp.lt.s32.totalorder %s21, 0
          %s156 = scalar_select %p155, %s21, 0
          %s157 = scalar_lea.vmem %s2, %s156
        $region20: #{tpu_custom_call.1} parent=11 // pred_fallthru
          _
      $region12: #{tpu_custom_call.1} parent=5 // pred_fallthru
        _
      %p158 = scmp.lt.s32.totalorder %s12, 2
      // Predicated region
      $region21: #{tpu_custom_call.1} parent=5 // pred_check
        %p159 = pneg %p158
      $region22: #{tpu_custom_call.1} parent=5 // pred_check_branch
        %161 = sbr.rel (%p159) target = $region24
      $region23: #{tpu_custom_call.1} parent=5 // pred_region
        // Predicated region
        $region25: #{tpu_custom_call.1} parent=23 // pred_check
          %p162 = pneg %p44
        $region26: #{tpu_custom_call.1} parent=23 // pred_check_branch
          %164 = sbr.rel (%p162) target = $region28
        $region27: #{tpu_custom_call.1} parent=23 // pred_region
          %s165 = smul.u32 32, %s20
          %p166 = scmp.lt.s32.totalorder %s165, 63
          %s167 = scalar_select %p166, %s165, 63
          %s168 = smul.addr %s167, 8
          %s169 = scalar_lea.vmem %s0, %s168
          %s170 = smul.u32 32, %s20
        $region28: #{tpu_custom_call.1} parent=23 // pred_fallthru
          _
      $region24: #{tpu_custom_call.1} parent=5 // pred_fallthru
        _
      %p171 = scmp.le.s32.totalorder 1, %s12
      %p172 = scmp.lt.s32.totalorder %s12, 3
      %p173 = pnand %p171, %p172
      %p174 = pneg %p173
      // Predicated region
      $region29: #{tpu_custom_call.1} parent=5 // pred_check
        _
      $region30: #{tpu_custom_call.1} parent=5 // pred_check_branch
        %176 = sbr.rel (%p173) target = $region32
      $region31: #{tpu_custom_call.1} parent=5 // pred_region
        %s177 = ssub.s32 %s12, 1
        %s178 = smul.u32 32, %s22
        %p179 = scmp.lt.s32.totalorder %s178, 63
        %s180 = scalar_select %p179, %s178, 63
        %s181 = smul.addr %s180, 8
        %s182 = scalar_lea.vmem %s0, %s181
        %p183 = pneg %p50
        %p184 = pneg %p47
        %p185 = scmp.lt.s32.totalorder %s21, 0
        %s186 = scalar_select %p185, %s21, 0
        %s187 = smul.addr %s186, 8
        %s188 = scalar_lea.vmem %s1, %s187
        %p189 = pneg %p76
        %p190 = pneg %p73
        %p191 = scmp.lt.s32.totalorder %s21, 0
        %s192 = scalar_select %p191, %s21, 0
        %s193 = scalar_lea.vmem %s2, %s192
        %p194 = pneg %p102
        %p195 = pneg %p99
        %p196 = pneg %p130
        %p197 = pneg %p127
        %s198 = sand.u32 %s117, 1
        %s199 = scalar_lea.sflag [#allocation3], %s198
        %s200 = sand.u32 %s117, 1
        %s201 = smul.addr %s200, 256
        %s202 = scalar_lea.vmem [#allocation2], %s201
        %s203 = smul.u32 32, %s22
        %p204 = scmp.lt.s32.totalorder %s203, 63
        %s205 = scalar_select %p204, %s203, 63
        %s206 = smul.addr %s205, 8
        %s207 = scalar_lea.vmem %s0, %s206
        %s208 = smul.u32 32, %s22
        %p209 = scmp.lt.s32.totalorder %s21, 0
        %s210 = scalar_select %p209, %s21, 0
        %s211 = smul.addr %s210, 8
        %s212 = scalar_lea.vmem %s1, %s211
        %p213 = scmp.lt.s32.totalorder %s21, 0
        %s214 = scalar_select %p213, %s21, 0
        %s215 = scalar_lea.vmem %s2, %s214
        %s216 = smul.u32 32, %s22
        %v217 = vld [vmem:[%s207] sm:$0xff]
        %v218 = vld [vmem:[%s207 + $0x8] sm:$0xff]
        %v219 = vld [vmem:[%s207 + $0x10] sm:$0xff]
        %v220 = vld [vmem:[%s207 + $0x18] sm:$0xff]
        %v221 = vld [vmem:[%s207 + $0x20] sm:$0xff]
        %v222 = vld [vmem:[%s207 + $0x28] sm:$0xff]
        %v223 = vld [vmem:[%s207 + $0x30] sm:$0xff]
        %v224 = vld [vmem:[%s207 + $0x38] sm:$0xff]
        %v225 = vld [vmem:[%s207 + $0x40] sm:$0xff]
        %v226 = vld [vmem:[%s207 + $0x48] sm:$0xff]
        %v227 = vld [vmem:[%s207 + $0x50] sm:$0xff]
        %v228 = vld [vmem:[%s207 + $0x58] sm:$0xff]
        %v229 = vld [vmem:[%s207 + $0x60] sm:$0xff]
        %v230 = vld [vmem:[%s207 + $0x68] sm:$0xff]
        %v231 = vld [vmem:[%s207 + $0x70] sm:$0xff]
        %v232 = vld [vmem:[%s207 + $0x78] sm:$0xff]
        %v233 = vld [vmem:[%s207 + $0x80] sm:$0xff]
        %v234 = vld [vmem:[%s207 + $0x88] sm:$0xff]
        %v235 = vld [vmem:[%s207 + $0x90] sm:$0xff]
        %v236 = vld [vmem:[%s207 + $0x98] sm:$0xff]
        %v237 = vld [vmem:[%s207 + $0xa0] sm:$0xff]
        %v238 = vld [vmem:[%s207 + $0xa8] sm:$0xff]
        %v239 = vld [vmem:[%s207 + $0xb0] sm:$0xff]
        %v240 = vld [vmem:[%s207 + $0xb8] sm:$0xff]
        %v241 = vld [vmem:[%s207 + $0xc0] sm:$0xff]
        %v242 = vld [vmem:[%s207 + $0xc8] sm:$0xff]
        %v243 = vld [vmem:[%s207 + $0xd0] sm:$0xff]
        %v244 = vld [vmem:[%s207 + $0xd8] sm:$0xff]
        %v245 = vld [vmem:[%s207 + $0xe0] sm:$0xff]
        %v246 = vld [vmem:[%s207 + $0xe8] sm:$0xff]
        %v247 = vld [vmem:[%s207 + $0xf0] sm:$0xff]
        %v248 = vld [vmem:[%s207 + $0xf8] sm:$0xff]
        %v249 = vld [vmem:[%s212] sm:$0xff]
        %v250 = vld [vmem:[%s212 + $0x8] sm:$0xff]
        %v251 = vld [vmem:[%s215] sm:$0x1]
        %v253 = vlaneseq
        %v254 = vshrl.u32 %v253, 7
        %v255 = vsub.s32 0, %v254
        %v256 = vrot.slane %v251, %v255
        %vm258 = vcmask 130048
        %v260 = vsel %vm258, %v217, 0
        %v263 = vsel %vm258, %v218, 0
        %v266 = vsel %vm258, %v219, 0
        %v269 = vsel %vm258, %v220, 0
        %v272 = vsel %vm258, %v221, 0
        %v275 = vsel %vm258, %v222, 0
        %v278 = vsel %vm258, %v223, 0
        %v281 = vsel %vm258, %v224, 0
        %v284 = vsel %vm258, %v225, 0
        %v287 = vsel %vm258, %v226, 0
        %v290 = vsel %vm258, %v227, 0
        %v293 = vsel %vm258, %v228, 0
        %v296 = vsel %vm258, %v229, 0
        %v299 = vsel %vm258, %v230, 0
        %v302 = vsel %vm258, %v231, 0
        %v305 = vsel %vm258, %v232, 0
        %v308 = vsel %vm258, %v233, 0
        %v311 = vsel %vm258, %v234, 0
        %v314 = vsel %vm258, %v235, 0
        %v317 = vsel %vm258, %v236, 0
        %v320 = vsel %vm258, %v237, 0
        %v323 = vsel %vm258, %v238, 0
        %v326 = vsel %vm258, %v239, 0
        %v329 = vsel %vm258, %v240, 0
        %v332 = vsel %vm258, %v241, 0
        %v335 = vsel %vm258, %v242, 0
        %v338 = vsel %vm258, %v243, 0
        %v341 = vsel %vm258, %v244, 0
        %v344 = vsel %vm258, %v245, 0
        %v347 = vsel %vm258, %v246, 0
        %v350 = vsel %vm258, %v247, 0
        %v353 = vsel %vm258, %v248, 0
        %355 = vmatprep.subr.mxu0 0.0
        %356 = vmatpush1.msra.mxu0 0.0
        %357 = vmatprep.subr.mxu0 0.0
        %358 = vmatpush1.msra.mxu0 0.0
        %359 = vmatprep.subr.mxu0 0.0
        %360 = vmatpush1.msra.mxu0 0.0
        %361 = vmatprep.subr.mxu0 0.0
        %362 = vmatpush1.msra.mxu0 0.0
        %363 = vmatprep.subr.mxu0 0.0
        %364 = vmatpush1.msra.mxu0 0.0
        %365 = vmatprep.subr.mxu0 0.0
        %366 = vmatpush1.msra.mxu0 0.0
        %367 = vmatprep.subr.mxu0 0.0
        %368 = vmatpush1.msra.mxu0 0.0
        %369 = vmatprep.subr.mxu0 0.0
        %370 = vmatpush1.msra.mxu0 0.0
        %371 = vmatprep.subr.mxu0 0.0
        %372 = vmatpush1.msra.mxu0 0.0
        %373 = vmatprep.subr.mxu0 0.0
        %374 = vmatpush1.msra.mxu0 0.0
        %375 = vmatprep.subr.mxu0 0.0
        %376 = vmatpush1.msra.mxu0 0.0
        %377 = vmatprep.subr.mxu0 0.0
        %378 = vmatpush1.msra.mxu0 0.0
        %379 = vmatprep.subr.mxu0 0.0
        %380 = vmatpush1.msra.mxu0 0.0
        %381 = vmatprep.subr.mxu0 0.0
        %382 = vmatpush1.msra.mxu0 0.0
        %383 = vmatprep.subr.mxu0 0.0
        %384 = vmatpush1.msra.mxu0 %v250
        %385 = vmatprep.subr.mxu0 0.0
        %386 = vmatpush1.msra.mxu0 %v249
        %387 = vmatprep.subr.mxu0 0.0
        %388 = vmatpush2.msra.mxu0 0.0
        %389 = vmatprep.subr.mxu0 0.0
        %390 = vmatpush2.msra.mxu0 0.0
        %391 = vmatprep.subr.mxu0 0.0
        %392 = vmatpush2.msra.mxu0 0.0
        %393 = vmatprep.subr.mxu0 0.0
        %394 = vmatpush2.msra.mxu0 0.0
        %395 = vmatprep.subr.mxu0 0.0
        %396 = vmatpush2.msra.mxu0 0.0
        %397 = vmatprep.subr.mxu0 0.0
        %398 = vmatpush2.msra.mxu0 0.0
        %399 = vmatprep.subr.mxu0 0.0
        %400 = vmatpush2.msra.mxu0 0.0
        %401 = vmatprep.subr.mxu0 0.0
        %402 = vmatpush2.msra.mxu0 0.0
        %403 = vmatprep.subr.mxu0 0.0
        %404 = vmatpush2.msra.mxu0 0.0
        %405 = vmatprep.subr.mxu0 0.0
        %406 = vmatpush2.msra.mxu0 0.0
        %407 = vmatprep.subr.mxu0 0.0
        %408 = vmatpush2.msra.mxu0 0.0
        %409 = vmatprep.subr.mxu0 0.0
        %410 = vmatpush2.msra.mxu0 0.0
        %411 = vmatprep.subr.mxu0 0.0
        %412 = vmatpush2.msra.mxu0 0.0
        %413 = vmatprep.subr.mxu0 0.0
        %414 = vmatpush2.msra.mxu0 0.0
        %415 = vmatprep.subr.mxu0 0.0
        %416 = vmatpush2.msra.mxu0 0.0
        %417 = vmatprep.subr.mxu0 0.0
        %418 = vmatpush2.msra.mxu0 0.0
        %419 = vmatprep.mubr.f32.mxu0 0.0
        %420 = vmatmul.mubr.f32.gmra.mxu0 %v260
        %v421 = vpop.f32.mrf.mxu0
        %v422 = vadd.f32 %v256, %v421
        %v423 = vpop.f32.mrf.mxu0
        %424 = vmatprep.mubr.f32.mxu0 0.0
        %425 = vmatmul.mubr.f32.gmra.mxu0 %v263
        %v426 = vpop.f32.mrf.mxu0
        %v427 = vadd.f32 %v256, %v426
        %v428 = vpop.f32.mrf.mxu0
        %429 = vmatprep.mubr.f32.mxu0 0.0
        %430 = vmatmul.mubr.f32.gmra.mxu0 %v266
        %v431 = vpop.f32.mrf.mxu0
        %v432 = vadd.f32 %v256, %v431
        %v433 = vpop.f32.mrf.mxu0
        %434 = vmatprep.mubr.f32.mxu0 0.0
        %435 = vmatmul.mubr.f32.gmra.mxu0 %v269
        %v436 = vpop.f32.mrf.mxu0
        %v437 = vadd.f32 %v256, %v436
        %v438 = vpop.f32.mrf.mxu0
        %439 = vmatprep.mubr.f32.mxu0 0.0
        %440 = vmatmul.mubr.f32.gmra.mxu0 %v272
        %v441 = vpop.f32.mrf.mxu0
        %v442 = vadd.f32 %v256, %v441
        %v443 = vpop.f32.mrf.mxu0
        %444 = vmatprep.mubr.f32.mxu0 0.0
        %445 = vmatmul.mubr.f32.gmra.mxu0 %v275
        %v446 = vpop.f32.mrf.mxu0
        %v447 = vadd.f32 %v256, %v446
        %v448 = vpop.f32.mrf.mxu0
        %449 = vmatprep.mubr.f32.mxu0 0.0
        %450 = vmatmul.mubr.f32.gmra.mxu0 %v278
        %v451 = vpop.f32.mrf.mxu0
        %v452 = vadd.f32 %v256, %v451
        %v453 = vpop.f32.mrf.mxu0
        %454 = vmatprep.mubr.f32.mxu0 0.0
        %455 = vmatmul.mubr.f32.gmra.mxu0 %v281
        %v456 = vpop.f32.mrf.mxu0
        %v457 = vadd.f32 %v256, %v456
        %v458 = vpop.f32.mrf.mxu0
        %459 = vmatprep.mubr.f32.mxu0 0.0
        %460 = vmatmul.mubr.f32.gmra.mxu0 %v284
        %v461 = vpop.f32.mrf.mxu0
        %v462 = vadd.f32 %v256, %v461
        %v463 = vpop.f32.mrf.mxu0
        %464 = vmatprep.mubr.f32.mxu0 0.0
        %465 = vmatmul.mubr.f32.gmra.mxu0 %v287
        %v466 = vpop.f32.mrf.mxu0
        %v467 = vadd.f32 %v256, %v466
        %v468 = vpop.f32.mrf.mxu0
        %469 = vmatprep.mubr.f32.mxu0 0.0
        %470 = vmatmul.mubr.f32.gmra.mxu0 %v290
        %v471 = vpop.f32.mrf.mxu0
        %v472 = vadd.f32 %v256, %v471
        %v473 = vpop.f32.mrf.mxu0
        %474 = vmatprep.mubr.f32.mxu0 0.0
        %475 = vmatmul.mubr.f32.gmra.mxu0 %v293
        %v476 = vpop.f32.mrf.mxu0
        %v477 = vadd.f32 %v256, %v476
        %v478 = vpop.f32.mrf.mxu0
        %479 = vmatprep.mubr.f32.mxu0 0.0
        %480 = vmatmul.mubr.f32.gmra.mxu0 %v296
        %v481 = vpop.f32.mrf.mxu0
        %v482 = vadd.f32 %v256, %v481
        %v483 = vpop.f32.mrf.mxu0
        %484 = vmatprep.mubr.f32.mxu0 0.0
        %485 = vmatmul.mubr.f32.gmra.mxu0 %v299
        %v486 = vpop.f32.mrf.mxu0
        %v487 = vadd.f32 %v256, %v486
        %v488 = vpop.f32.mrf.mxu0
        %489 = vmatprep.mubr.f32.mxu0 0.0
        %490 = vmatmul.mubr.f32.gmra.mxu0 %v302
        %v491 = vpop.f32.mrf.mxu0
        %v492 = vadd.f32 %v256, %v491
        %v493 = vpop.f32.mrf.mxu0
        %494 = vmatprep.mubr.f32.mxu0 0.0
        %495 = vmatmul.mubr.f32.gmra.mxu0 %v305
        %v496 = vpop.f32.mrf.mxu0
        %v497 = vadd.f32 %v256, %v496
        %v498 = vpop.f32.mrf.mxu0
        %499 = vmatprep.mubr.f32.mxu0 0.0
        %500 = vmatmul.mubr.f32.gmra.mxu0 %v308
        %v501 = vpop.f32.mrf.mxu0
        %v502 = vadd.f32 %v256, %v501
        %v503 = vpop.f32.mrf.mxu0
        %504 = vmatprep.mubr.f32.mxu0 0.0
        %505 = vmatmul.mubr.f32.gmra.mxu0 %v311
        %v506 = vpop.f32.mrf.mxu0
        %v507 = vadd.f32 %v256, %v506
        %v508 = vpop.f32.mrf.mxu0
        %509 = vmatprep.mubr.f32.mxu0 0.0
        %510 = vmatmul.mubr.f32.gmra.mxu0 %v314
        %v511 = vpop.f32.mrf.mxu0
        %v512 = vadd.f32 %v256, %v511
        %v513 = vpop.f32.mrf.mxu0
        %514 = vmatprep.mubr.f32.mxu0 0.0
        %515 = vmatmul.mubr.f32.gmra.mxu0 %v317
        %v516 = vpop.f32.mrf.mxu0
        %v517 = vadd.f32 %v256, %v516
        %v518 = vpop.f32.mrf.mxu0
        %519 = vmatprep.mubr.f32.mxu0 0.0
        %520 = vmatmul.mubr.f32.gmra.mxu0 %v320
        %v521 = vpop.f32.mrf.mxu0
        %v522 = vadd.f32 %v256, %v521
        %v523 = vpop.f32.mrf.mxu0
        %524 = vmatprep.mubr.f32.mxu0 0.0
        %525 = vmatmul.mubr.f32.gmra.mxu0 %v323
        %v526 = vpop.f32.mrf.mxu0
        %v527 = vadd.f32 %v256, %v526
        %v528 = vpop.f32.mrf.mxu0
        %529 = vmatprep.mubr.f32.mxu0 0.0
        %530 = vmatmul.mubr.f32.gmra.mxu0 %v326
        %v531 = vpop.f32.mrf.mxu0
        %v532 = vadd.f32 %v256, %v531
        %v533 = vpop.f32.mrf.mxu0
        %534 = vmatprep.mubr.f32.mxu0 0.0
        %535 = vmatmul.mubr.f32.gmra.mxu0 %v329
        %v536 = vpop.f32.mrf.mxu0
        %v537 = vadd.f32 %v256, %v536
        %v538 = vpop.f32.mrf.mxu0
        %539 = vmatprep.mubr.f32.mxu0 0.0
        %540 = vmatmul.mubr.f32.gmra.mxu0 %v332
        %v541 = vpop.f32.mrf.mxu0
        %v542 = vadd.f32 %v256, %v541
        %v543 = vpop.f32.mrf.mxu0
        %544 = vmatprep.mubr.f32.mxu0 0.0
        %545 = vmatmul.mubr.f32.gmra.mxu0 %v335
        %v546 = vpop.f32.mrf.mxu0
        %v547 = vadd.f32 %v256, %v546
        %v548 = vpop.f32.mrf.mxu0
        %549 = vmatprep.mubr.f32.mxu0 0.0
        %550 = vmatmul.mubr.f32.gmra.mxu0 %v338
        %v551 = vpop.f32.mrf.mxu0
        %v552 = vadd.f32 %v256, %v551
        %v553 = vpop.f32.mrf.mxu0
        %554 = vmatprep.mubr.f32.mxu0 0.0
        %555 = vmatmul.mubr.f32.gmra.mxu0 %v341
        %v556 = vpop.f32.mrf.mxu0
        %v557 = vadd.f32 %v256, %v556
        %v558 = vpop.f32.mrf.mxu0
        %559 = vmatprep.mubr.f32.mxu0 0.0
        %560 = vmatmul.mubr.f32.gmra.mxu0 %v344
        %v561 = vpop.f32.mrf.mxu0
        %v562 = vadd.f32 %v256, %v561
        %v563 = vpop.f32.mrf.mxu0
        %564 = vmatprep.mubr.f32.mxu0 0.0
        %565 = vmatmul.mubr.f32.gmra.mxu0 %v347
        %v566 = vpop.f32.mrf.mxu0
        %v567 = vadd.f32 %v256, %v566
        %v568 = vpop.f32.mrf.mxu0
        %569 = vmatprep.mubr.f32.mxu0 0.0
        %570 = vmatmul.mubr.f32.gmra.mxu0 %v350
        %v571 = vpop.f32.mrf.mxu0
        %v572 = vadd.f32 %v256, %v571
        %v573 = vpop.f32.mrf.mxu0
        %574 = vmatprep.mubr.f32.mxu0 0.0
        %575 = vmatmul.mubr.f32.gmra.mxu0 %v353
        %v576 = vpop.f32.mrf.mxu0
        %v577 = vadd.f32 %v256, %v576
        %v578 = vpop.f32.mrf.mxu0
        %579 = vdwg.mxu0
        %v580 = vmax.f32 %v422, 0.0
        %v581 = vmax.f32 %v427, 0.0
        %v582 = vmax.f32 %v432, 0.0
        %v583 = vmax.f32 %v437, 0.0
        %v584 = vmax.f32 %v442, 0.0
        %v585 = vmax.f32 %v447, 0.0
        %v586 = vmax.f32 %v452, 0.0
        %v587 = vmax.f32 %v457, 0.0
        %v588 = vmax.f32 %v462, 0.0
        %v589 = vmax.f32 %v467, 0.0
        %v590 = vmax.f32 %v472, 0.0
        %v591 = vmax.f32 %v477, 0.0
        %v592 = vmax.f32 %v482, 0.0
        %v593 = vmax.f32 %v487, 0.0
        %v594 = vmax.f32 %v492, 0.0
        %v595 = vmax.f32 %v497, 0.0
        %v596 = vmax.f32 %v502, 0.0
        %v597 = vmax.f32 %v507, 0.0
        %v598 = vmax.f32 %v512, 0.0
        %v599 = vmax.f32 %v517, 0.0
        %v600 = vmax.f32 %v522, 0.0
        %v601 = vmax.f32 %v527, 0.0
        %v602 = vmax.f32 %v532, 0.0
        %v603 = vmax.f32 %v537, 0.0
        %v604 = vmax.f32 %v542, 0.0
        %v605 = vmax.f32 %v547, 0.0
        %v606 = vmax.f32 %v552, 0.0
        %v607 = vmax.f32 %v557, 0.0
        %v608 = vmax.f32 %v562, 0.0
        %v609 = vmax.f32 %v567, 0.0
        %v610 = vmax.f32 %v572, 0.0
        %v611 = vmax.f32 %v577, 0.0
        %612 = vst [vmem:[%s202] sm:$0xff] %v580
        %613 = vst [vmem:[%s202 + $0x8] sm:$0xff] %v581
        %614 = vst [vmem:[%s202 + $0x10] sm:$0xff] %v582
        %615 = vst [vmem:[%s202 + $0x18] sm:$0xff] %v583
        %616 = vst [vmem:[%s202 + $0x20] sm:$0xff] %v584
        %617 = vst [vmem:[%s202 + $0x28] sm:$0xff] %v585
        %618 = vst [vmem:[%s202 + $0x30] sm:$0xff] %v586
        %619 = vst [vmem:[%s202 + $0x38] sm:$0xff] %v587
        %620 = vst [vmem:[%s202 + $0x40] sm:$0xff] %v588
        %621 = vst [vmem:[%s202 + $0x48] sm:$0xff] %v589
        %622 = vst [vmem:[%s202 + $0x50] sm:$0xff] %v590
        %623 = vst [vmem:[%s202 + $0x58] sm:$0xff] %v591
        %624 = vst [vmem:[%s202 + $0x60] sm:$0xff] %v592
        %625 = vst [vmem:[%s202 + $0x68] sm:$0xff] %v593
        %626 = vst [vmem:[%s202 + $0x70] sm:$0xff] %v594
        %627 = vst [vmem:[%s202 + $0x78] sm:$0xff] %v595
        %628 = vst [vmem:[%s202 + $0x80] sm:$0xff] %v596
        %629 = vst [vmem:[%s202 + $0x88] sm:$0xff] %v597
        %630 = vst [vmem:[%s202 + $0x90] sm:$0xff] %v598
        %631 = vst [vmem:[%s202 + $0x98] sm:$0xff] %v599
        %632 = vst [vmem:[%s202 + $0xa0] sm:$0xff] %v600
        %633 = vst [vmem:[%s202 + $0xa8] sm:$0xff] %v601
        %634 = vst [vmem:[%s202 + $0xb0] sm:$0xff] %v602
        %635 = vst [vmem:[%s202 + $0xb8] sm:$0xff] %v603
        %636 = vst [vmem:[%s202 + $0xc0] sm:$0xff] %v604
        %637 = vst [vmem:[%s202 + $0xc8] sm:$0xff] %v605
        %638 = vst [vmem:[%s202 + $0xd0] sm:$0xff] %v606
        %639 = vst [vmem:[%s202 + $0xd8] sm:$0xff] %v607
        %640 = vst [vmem:[%s202 + $0xe0] sm:$0xff] %v608
        %641 = vst [vmem:[%s202 + $0xe8] sm:$0xff] %v609
        %642 = vst [vmem:[%s202 + $0xf0] sm:$0xff] %v610
        %643 = vst [vmem:[%s202 + $0xf8] sm:$0xff] %v611
        %s644 = sand.u32 %s117, 1
        %s645 = scalar_lea.sflag [#allocation3], %s644
        %s646 = sand.u32 %s117, 1
        %s647 = smul.addr %s646, 256
        %s648 = scalar_lea.vmem [#allocation2], %s647
        // Predicated region
        $region33: #{tpu_custom_call.1} parent=31 // pred_check
          %p649 = pneg %p127
        $region34: #{tpu_custom_call.1} parent=31 // pred_check_branch
          %651 = sbr.rel (%p649) target = $region36
        $region35: #{tpu_custom_call.1} parent=31 // pred_region
          %s652 = smul.u32 32, %s22
          %s654 = ssub.s32 4096, 4096
          %655 = vsyncadd %s645, %s654
          %s656 = sadd.s32 %s21, %s652
          %s657 = smul.addr %s656, 128
          %s658 = scalar_lea.hbm %s3, %s657
          %s659 = sshll.u32 %s648, 4
          %s660 = int_to_ptr.vmem [resolvable:$true] %s659
          %665 = dma.vmem_to_hbm [thread:$0]  %s660, 4096, %s658, %s645, 128, 128, 8
        $region36: #{tpu_custom_call.1} parent=31 // pred_fallthru
          _
      $region32: #{tpu_custom_call.1} parent=5 // pred_fallthru
        _
      %p666 = scmp.le.s32.totalorder 2, %s12
      // Predicated region
      $region37: #{tpu_custom_call.1} parent=5 // pred_check
        %p667 = pneg %p666
      $region38: #{tpu_custom_call.1} parent=5 // pred_check_branch
        %669 = sbr.rel (%p667) target = $region40
      $region39: #{tpu_custom_call.1} parent=5 // pred_region
        %s670 = ssub.s32 %s12, 2
        // Predicated region
        $region41: #{tpu_custom_call.1} parent=39 // pred_check
          %p671 = pneg %p133
        $region42: #{tpu_custom_call.1} parent=39 // pred_check_branch
          %673 = sbr.rel (%p671) target = $region44
        $region43: #{tpu_custom_call.1} parent=39 // pred_region
          %s674 = sand.u32 %s118, 1
          %s675 = scalar_lea.sflag [#allocation3], %s674
          %s676 = sand.u32 %s118, 1
          %s677 = smul.addr %s676, 256
          %s678 = scalar_lea.vmem [#allocation2], %s677
          %679 = dma.done %s675, 4096
        $region44: #{tpu_custom_call.1} parent=39 // pred_fallthru
          _
      $region40: #{tpu_custom_call.1} parent=5 // pred_fallthru
        _
    $region6: #{tpu_custom_call.1} parent=1 // loop_footer
      %s16 = sadd.s32 1, %s12
    $region7: #{tpu_custom_call.1} parent=1 // loop_footer_branch
      %11 = sbr.rel target = $region3
    $region8: #{tpu_custom_call.1} parent=1 // loop_exit
      _
    %680 = vsyncpa [#allocation3], 1
    %s681 = scalar_lea.sflag [#allocation3], 1
    %682 = vsyncpa %s681, 1

</llo_original>
